<compile_context>
chip_gen: v6e
topology: v6e:2x2x1
jax: 0.10.0
libtpu: 0.0.40
codegen_flags: <defaults>
</compile_context>

<pallas_src>
import jax
import jax.numpy as jnp
from jax.experimental import pallas as pl
from jax.experimental.pallas import tpu as pltpu


def _tpu_budgets():
    """Per-generation VMEM sizing for the feature-tile pipeline."""
    kind = ""
    try:
        kind = jax.devices()[0].device_kind.lower()
    except Exception:
        pass
    if "v7" in kind:
        # 64 MiB physical VMEM, 2 TensorCores -> shard batch across cores.
        return dict(feat_budget=16 << 20, vmem_limit=48 << 20, core_parallel=True)
    if "v6" in kind or "v5" in kind:
        # 128 MiB physical VMEM -> larger tiles to reach the HBM roofline.
        return dict(feat_budget=32 << 20, vmem_limit=96 << 20, core_parallel=False)
    # Unknown generation: stay conservative.
    return dict(feat_budget=8 << 20, vmem_limit=32 << 20, core_parallel=False)


def _fuse_branch_weights(params):
    # first layer: (C, 128) = [w11 | w12], bias (1, 128)
    w1 = jnp.concatenate([params["w11"], params["w12"]], axis=1)
    b1 = jnp.concatenate([params["b11"], params["b12"]], axis=1)
    # second layer: block-diagonal (128, 3); rows 0:64 feed cols 0:2
    # (linear2_1), rows 64:128 feed col 2 (linear2_2) -> output == concat.
    w2 = jnp.zeros((128, 3), jnp.float32)
    w2 = w2.at[:64, :2].set(params["w21"])
    w2 = w2.at[64:, 2:].set(params["w22"])
    b2 = jnp.concatenate([params["b21"], params["b22"]], axis=1)  # (1, 3)
    return w1, b1, w2, b2


def visualnet_motion_head(features_ncthw, params, *, max_s_blk=None, max_n_blk=8):
    """features_ncthw: (N, C, T, H, W) float32/bfloat16 backbone feature map."""
    n, c, t, h, w = features_ncthw.shape
    s = t * h * w

    # (N, C, T, H, W) -> (N, C, S): contiguous, free reshape.  No padding.
    feat = features_ncthw.reshape(n, c, s)

    budgets = _tpu_budgets()
    itemsize = jnp.dtype(feat.dtype).itemsize

    # --- tiling -------------------------------------------------------------
    n_blk = max(1, min(max_n_blk, n))
    s_ceil = pl.cdiv(s, 128) * 128
    # Size the S tile from the VMEM budget (assume 3 pipeline buffers), round
    # down to a multiple of 128.  Cap at 4096 lanes: tiles are already
    # multi-MiB there and the in-kernel accumulate unroll stays short.
    by_budget = budgets["feat_budget"] // (3 * n_blk * c * itemsize)
    s_blk = max(128, min((by_budget // 128) * 128, 4096))
    s_blk = min(s_blk, s_ceil)
    if max_s_blk is not None:
        s_blk = min(s_blk, max(128, (max_s_blk // 128) * 128))

    n_s_steps = pl.cdiv(s, s_blk)
    n_n_steps = pl.cdiv(n, n_blk)
    mask_tail = (s % s_blk) != 0
    n_groups = s_blk // 128
    inv_s = 1.0 / float(s)

    w1, b1, w2, b2 = _fuse_branch_weights(params)

    # --- kernel -------------------------------------------------------------
    def kernel(feat_ref, w1_ref, b1_ref, w2_ref, b2_ref, out_ref, acc_ref):
        j = pl.program_id(1)

        @pl.when(j == 0)
        def _init():
            acc_ref[...] = jnp.zeros_like(acc_ref)

        tile = feat_ref[...].astype(jnp.float32)               # (n_blk, c, s_blk)
        if mask_tail:
            # Zero out-of-range lanes of the (possibly OOB-padded) last S tile.
            lane = jax.lax.broadcasted_iota(jnp.int32, tile.shape, 2)
            tile = jnp.where(j * s_blk + lane < s, tile, 0.0)

        # Lane-dense partial sums: add whole 128-lane groups (pure VPU adds,
        # no per-step cross-lane reduce / relayout).
        partial = tile[:, :, 0:128]
        for g in range(1, n_groups):
            partial = partial + tile[:, :, g * 128:(g + 1) * 128]
        acc_ref[...] += partial                                # (n_blk, c, 128)

        @pl.when(j == pl.num_programs(1) - 1)
        def _finalize():
            # Single cross-lane reduce + fused two-branch MLP.
            pooled = jnp.sum(acc_ref[...], axis=-1) * inv_s    # (n_blk, c)
            hdn = jnp.dot(pooled, w1_ref[...],
                          preferred_element_type=jnp.float32) + b1_ref[...]
            hdn = jnp.maximum(hdn, 0.0)                        # fused ReLU
            y = jnp.dot(hdn, w2_ref[...],
                        preferred_element_type=jnp.float32) + b2_ref[...]
            out_ref[...] = y.reshape((n_blk, 1, 3))

    # --- pallas_call --------------------------------------------------------
    def run(dim_sem, use_buffered):
        if use_buffered:
            feat_spec = pl.BlockSpec((n_blk, c, s_blk), lambda i, j: (i, 0, j),
                                     pipeline_mode=pl.Buffered(3))
        else:
            feat_spec = pl.BlockSpec((n_blk, c, s_blk), lambda i, j: (i, 0, j))
        return pl.pallas_call(
            kernel,
            out_shape=jax.ShapeDtypeStruct((n, 1, 3), jnp.float32),
            grid_spec=pltpu.PrefetchScalarGridSpec(
                num_scalar_prefetch=0,
                grid=(n_n_steps, n_s_steps),
                in_specs=[
                    feat_spec,
                    pl.BlockSpec((c, 128), lambda i, j: (0, 0)),
                    pl.BlockSpec((1, 128), lambda i, j: (0, 0)),
                    pl.BlockSpec((128, 3), lambda i, j: (0, 0)),
                    pl.BlockSpec((1, 3), lambda i, j: (0, 0)),
                ],
                out_specs=pl.BlockSpec((n_blk, 1, 3), lambda i, j: (i, 0, 0)),
                scratch_shapes=[pltpu.VMEM((n_blk, c, 128), jnp.float32)],
            ),
            compiler_params=pltpu.CompilerParams(
                dimension_semantics=dim_sem,
                vmem_limit_bytes=budgets["vmem_limit"],
            ),
        )(feat, w1, b1, w2, b2)

    batch_sem = pltpu.CORE_PARALLEL if budgets["core_parallel"] else pltpu.PARALLEL
    try:
        out = run((batch_sem, pltpu.ARBITRARY), use_buffered=(n_s_steps > 2))
    except Exception:
        # Conservative retry if CORE_PARALLEL / Buffered(3) are rejected here.
        out = run((pltpu.PARALLEL, pltpu.ARBITRARY), use_buffered=False)

    return out.reshape(n, 3)


def init_params(key, in_features):
    """Deterministic synthetic parameters matching the module's shapes."""
    ks = jax.random.split(key, 8)
    s_in = 1.0 / jnp.sqrt(jnp.float32(in_features))
    s_64 = 1.0 / jnp.sqrt(jnp.float32(64))
    return dict(
        # linear1_1: in_features -> 64
        w11=jax.random.normal(ks[0], (in_features, 64), jnp.float32) * s_in,
        b11=jax.random.normal(ks[1], (1, 64), jnp.float32) * 0.01,
        # linear1_2: in_features -> 64
        w12=jax.random.normal(ks[2], (in_features, 64), jnp.float32) * s_in,
        b12=jax.random.normal(ks[3], (1, 64), jnp.float32) * 0.01,
        # linear2_1: 64 -> 2
        w21=jax.random.normal(ks[4], (64, 2), jnp.float32) * s_64,
        b21=jax.random.normal(ks[5], (1, 2), jnp.float32) * 0.01,
        # linear2_2: 64 -> 1
        w22=jax.random.normal(ks[6], (64, 1), jnp.float32) * s_64,
        b22=jax.random.normal(ks[7], (1, 1), jnp.float32) * 0.01,
    )


def _reference(feats, p):
    pooled = jnp.mean(feats, axis=(2, 3, 4))                      # (N, C)
    f1 = jax.nn.relu(pooled @ p["w11"] + p["b11"])
    f2 = jax.nn.relu(pooled @ p["w12"] + p["b12"])
    return jnp.concatenate(
        [f1 @ p["w21"] + p["b21"], f2 @ p["w22"] + p["b22"]], axis=1)


if __name__ == "__main__":
    key = jax.random.PRNGKey(0)
    k_feat, k_params, k_feat2 = jax.random.split(key, 3)

    # Small shapes: batch=2, backbone output channels=32 (== num_paths *
    # resblocks_out_channels), feature volume T=4, H=7, W=7 (S=196 exercises
    # the ragged-lane tail masking).
    N, C, T, H, W = 2, 32, 4, 7, 7
    features = jax.random.normal(k_feat, (N, C, T, H, W), jnp.float32)
    params = init_params(k_params, C)

    y = jax.block_until_ready(visualnet_motion_head(features, params))
    ref = _reference(features, params)
    assert y.shape == (N, 3), y.shape
    assert jnp.allclose(y, ref, atol=1e-4, rtol=1e-4), (y, ref)

    # Second check: ragged batch (N > n_blk) plus a multi-step S reduction
    # with a masked tail, by capping the S tile at 128 lanes.
    N2 = 9
    features2 = jax.random.normal(k_feat2, (N2, C, T, H, W), jnp.float32)
    y2 = jax.block_until_ready(
        visualnet_motion_head(features2, params, max_s_blk=128))
    ref2 = _reference(features2, params)
    assert y2.shape == (N2, 3), y2.shape
    assert jnp.allclose(y2, ref2, atol=1e-4, rtol=1e-4), (y2, ref2)

    print("KERNEL_OK")
</pallas_src>

<mosaic_0001>
module attributes {stable_mosaic.version = 11 : i64} {
  func.func @kernel(%arg0: i32, %arg1: i32, %arg2: memref<2x32x256xf32, #tpu.memory_space<vmem>>, %arg3: memref<32x128xf32, #tpu.memory_space<vmem>>, %arg4: memref<1x128xf32, #tpu.memory_space<vmem>>, %arg5: memref<128x3xf32, #tpu.memory_space<vmem>>, %arg6: memref<1x3xf32, #tpu.memory_space<vmem>>, %arg7: memref<2x1x3xf32, #tpu.memory_space<vmem>>, %arg8: memref<2x32x128xf32, #tpu.memory_space<vmem>>) attributes {dimension_semantics = [#tpu.dimension_semantics<parallel>, #tpu.dimension_semantics<arbitrary>], iteration_bounds = array<i64: 1, 1>, scalar_prefetch = 0 : i64, scratch_operands = 1 : i64, tpu.core_type = #tpu.core_type<tc>, window_params = [{transform_indices = @transform_0, window_bounds = array<i64: 2, 32, 256>}, {pipeline_mode = #tpu.pipeline_mode<synchronous>, transform_indices = @transform_1, window_bounds = array<i64: 32, 128>}, {pipeline_mode = #tpu.pipeline_mode<synchronous>, transform_indices = @transform_2, window_bounds = array<i64: 1, 128>}, {pipeline_mode = #tpu.pipeline_mode<synchronous>, transform_indices = @transform_3, window_bounds = array<i64: 128, 3>}, {pipeline_mode = #tpu.pipeline_mode<synchronous>, transform_indices = @transform_4, window_bounds = array<i64: 1, 3>}, {transform_indices = @transform_5, window_bounds = array<i64: 2, 1, 3>}]} {
    %c0_i32 = arith.constant 0 : i32
    %0 = arith.cmpi eq, %arg1, %c0_i32 : i32
    %1 = arith.extui %0 : i1 to i32
    %c0_i32_0 = arith.constant 0 : i32
    %2 = arith.cmpi ne, %1, %c0_i32_0 : i32
    scf.if %2 {
      %cst_11 = arith.constant 0.000000e+00 : f32
      %21 = vector.broadcast %cst_11 : f32 to vector<2x32x128xf32>
      %c0_12 = arith.constant 0 : index
      %c0_13 = arith.constant 0 : index
      %c0_14 = arith.constant 0 : index
      %22 = vector.load %arg8[%c0_12, %c0_13, %c0_14] : memref<2x32x128xf32, #tpu.memory_space<vmem>>, vector<2x32x128xf32>
      tpu.vector_store %arg8[%c0_12, %c0_13, %c0_14], %21 {strides = array<i32>} : memref<2x32x128xf32, #tpu.memory_space<vmem>>, vector<2x32x128xf32>,
    } else {
    }
    %c0 = arith.constant 0 : index
    %c0_1 = arith.constant 0 : index
    %c0_2 = arith.constant 0 : index
    %3 = vector.load %arg2[%c0, %c0_1, %c0_2] : memref<2x32x256xf32, #tpu.memory_space<vmem>>, vector<2x32x256xf32>
    %4 = tpu.iota {dimensions = array<i32: 2>} : vector<2x32x256xi32>
    %c256_i32 = arith.constant 256 : i32
    %5 = arith.muli %arg1, %c256_i32 : i32
    %6 = vector.broadcast %5 : i32 to vector<2x32x256xi32>
    %7 = arith.addi %6, %4 : vector<2x32x256xi32>
    %c196_i32 = arith.constant 196 : i32
    %8 = vector.broadcast %c196_i32 : i32 to vector<2x32x256xi32>
    %9 = arith.cmpi slt, %7, %8 : vector<2x32x256xi32>
    %cst = arith.constant 0.000000e+00 : f32
    %10 = vector.broadcast %cst : f32 to vector<2x32x256xf32>
    %11 = arith.select %9, %3, %10 : vector<2x32x256xi1>, vector<2x32x256xf32>
    %12 = vector.extract_strided_slice %11 {offsets = [0, 0, 0], sizes = [2, 32, 128], strides = [1, 1, 1]} : vector<2x32x256xf32> to vector<2x32x128xf32>
    %13 = vector.extract_strided_slice %11 {offsets = [0, 0, 128], sizes = [2, 32, 128], strides = [1, 1, 1]} : vector<2x32x256xf32> to vector<2x32x128xf32>
    %14 = arith.addf %12, %13 : vector<2x32x128xf32>
    %c0_3 = arith.constant 0 : index
    %c0_4 = arith.constant 0 : index
    %c0_5 = arith.constant 0 : index
    %15 = vector.load %arg8[%c0_3, %c0_4, %c0_5] : memref<2x32x128xf32, #tpu.memory_space<vmem>>, vector<2x32x128xf32>
    %16 = arith.addf %15, %14 : vector<2x32x128xf32>
    %c0_6 = arith.constant 0 : index
    %c0_7 = arith.constant 0 : index
    %c0_8 = arith.constant 0 : index
    %17 = vector.load %arg8[%c0_6, %c0_7, %c0_8] : memref<2x32x128xf32, #tpu.memory_space<vmem>>, vector<2x32x128xf32>
    tpu.vector_store %arg8[%c0_6, %c0_7, %c0_8], %16 {strides = array<i32>} : memref<2x32x128xf32, #tpu.memory_space<vmem>>, vector<2x32x128xf32>,
    %c0_i32_9 = arith.constant 0 : i32
    %18 = arith.cmpi eq, %arg1, %c0_i32_9 : i32
    %19 = arith.extui %18 : i1 to i32
    %c0_i32_10 = arith.constant 0 : i32
    %20 = arith.cmpi ne, %19, %c0_i32_10 : i32
    scf.if %20 {
      %c0_11 = arith.constant 0 : index
      %c0_12 = arith.constant 0 : index
      %c0_13 = arith.constant 0 : index
      %21 = vector.load %arg8[%c0_11, %c0_12, %c0_13] : memref<2x32x128xf32, #tpu.memory_space<vmem>>, vector<2x32x128xf32>
      %cst_14 = arith.constant dense<0.000000e+00> : vector<2x32xf32>
      %22 = vector.multi_reduction <add>, %21, %cst_14 [2] : vector<2x32x128xf32> to vector<2x32xf32>
      %cst_15 = arith.constant 0.00510204071 : f32
      %23 = vector.broadcast %cst_15 : f32 to vector<2x32xf32>
      %24 = arith.mulf %22, %23 : vector<2x32xf32>
      %c0_16 = arith.constant 0 : index
      %c0_17 = arith.constant 0 : index
      %25 = vector.load %arg3[%c0_16, %c0_17] : memref<32x128xf32, #tpu.memory_space<vmem>>, vector<32x128xf32>
      %cst_18 = arith.constant dense<0.000000e+00> : vector<2x128xf32>
      %26 = tpu.matmul %24, %25, %cst_18 {dimension_numbers = #tpu.dot_dimension_numbers<[1], [0], [0], [1], [0, 0, 1, 1], [], []>} : vector<2x32xf32>, vector<32x128xf32>, vector<2x128xf32> -> vector<2x128xf32>
      %c0_19 = arith.constant 0 : index
      %c0_20 = arith.constant 0 : index
      %27 = vector.load %arg4[%c0_19, %c0_20] : memref<1x128xf32, #tpu.memory_space<vmem>>, vector<1x128xf32>
      %28 = vector.broadcast %27 : vector<1x128xf32> to vector<2x128xf32>
      %29 = arith.addf %26, %28 : vector<2x128xf32>
      %cst_21 = arith.constant 0.000000e+00 : f32
      %30 = vector.broadcast %cst_21 : f32 to vector<2x128xf32>
      %31 = arith.maximumf %29, %30 : vector<2x128xf32>
      %c0_22 = arith.constant 0 : index
      %c0_23 = arith.constant 0 : index
      %32 = vector.load %arg5[%c0_22, %c0_23] : memref<128x3xf32, #tpu.memory_space<vmem>>, vector<128x3xf32>
      %cst_24 = arith.constant dense<0.000000e+00> : vector<2x3xf32>
      %33 = tpu.matmul %31, %32, %cst_24 {dimension_numbers = #tpu.dot_dimension_numbers<[1], [0], [0], [1], [0, 0, 1, 1], [], []>} : vector<2x128xf32>, vector<128x3xf32>, vector<2x3xf32> -> vector<2x3xf32>
      %c0_25 = arith.constant 0 : index
      %c0_26 = arith.constant 0 : index
      %34 = vector.load %arg6[%c0_25, %c0_26] : memref<1x3xf32, #tpu.memory_space<vmem>>, vector<1x3xf32>
      %35 = vector.broadcast %34 : vector<1x3xf32> to vector<2x3xf32>
      %36 = arith.addf %33, %35 : vector<2x3xf32>
      %37 = vector.shape_cast %36 : vector<2x3xf32> to vector<2x1x3xf32>
      %c0_27 = arith.constant 0 : index
      %c0_28 = arith.constant 0 : index
      %c0_29 = arith.constant 0 : index
      %38 = vector.load %arg7[%c0_27, %c0_28, %c0_29] : memref<2x1x3xf32, #tpu.memory_space<vmem>>, vector<2x1x3xf32>
      tpu.vector_store %arg7[%c0_27, %c0_28, %c0_29], %37 {strides = array<i32>} : memref<2x1x3xf32, #tpu.memory_space<vmem>>, vector<2x1x3xf32>,
    } else {
    }
    return
  }
  func.func @transform_0(%arg0: i32, %arg1: i32) -> (i32, i32, i32) {
    %c0_i32 = arith.constant 0 : i32
    %c0_i32_0 = arith.constant 0 : i32
    return %arg0, %c0_i32, %arg1 : i32, i32, i32
  }
  func.func @transform_1(%arg0: i32, %arg1: i32) -> (i32, i32) {
    %c0_i32 = arith.constant 0 : i32
    %c0_i32_0 = arith.constant 0 : i32
    %c0_i32_1 = arith.constant 0 : i32
    return %c0_i32, %c0_i32_0 : i32, i32
  }
  func.func @transform_2(%arg0: i32, %arg1: i32) -> (i32, i32) {
    %c0_i32 = arith.constant 0 : i32
    %c0_i32_0 = arith.constant 0 : i32
    %c0_i32_1 = arith.constant 0 : i32
    return %c0_i32, %c0_i32_0 : i32, i32
  }
  func.func @transform_3(%arg0: i32, %arg1: i32) -> (i32, i32) {
    %c0_i32 = arith.constant 0 : i32
    %c0_i32_0 = arith.constant 0 : i32
    %c0_i32_1 = arith.constant 0 : i32
    return %c0_i32, %c0_i32_0 : i32, i32
  }
  func.func @transform_4(%arg0: i32, %arg1: i32) -> (i32, i32) {
    %c0_i32 = arith.constant 0 : i32
    %c0_i32_0 = arith.constant 0 : i32
    %c0_i32_1 = arith.constant 0 : i32
    return %c0_i32, %c0_i32_0 : i32, i32
  }
  func.func @transform_5(%arg0: i32, %arg1: i32) -> (i32, i32, i32) {
    %c0_i32 = arith.constant 0 : i32
    %c0_i32_0 = arith.constant 0 : i32
    %c0_i32_1 = arith.constant 0 : i32
    return %arg0, %c0_i32, %c0_i32_0 : i32, i32, i32
  }
}

module attributes {stable_mosaic.version = 11 : i64} {
  func.func @kernel(%arg0: i32, %arg1: i32, %arg2: memref<2x32x256xf32, #tpu.memory_space<vmem>>, %arg3: memref<32x128xf32, #tpu.memory_space<vmem>>, %arg4: memref<1x128xf32, #tpu.memory_space<vmem>>, %arg5: memref<128x3xf32, #tpu.memory_space<vmem>>, %arg6: memref<1x3xf32, #tpu.memory_space<vmem>>, %arg7: memref<2x1x3xf32, #tpu.memory_space<vmem>>, %arg8: memref<2x32x128xf32, #tpu.memory_space<vmem>>) attributes {dimension_semantics = [#tpu.dimension_semantics<parallel>, #tpu.dimension_semantics<arbitrary>], iteration_bounds = array<i64: 1, 1>, scalar_prefetch = 0 : i64, scratch_operands = 1 : i64, tpu.core_type = #tpu.core_type<tc>, window_params = [{transform_indices = @transform_0, window_bounds = array<i64: 2, 32, 256>}, {pipeline_mode = #tpu.pipeline_mode<synchronous>, transform_indices = @transform_1, window_bounds = array<i64: 32, 128>}, {pipeline_mode = #tpu.pipeline_mode<synchronous>, transform_indices = @transform_2, window_bounds = array<i64: 1, 128>}, {pipeline_mode = #tpu.pipeline_mode<synchronous>, transform_indices = @transform_3, window_bounds = array<i64: 128, 3>}, {pipeline_mode = #tpu.pipeline_mode<synchronous>, transform_indices = @transform_4, window_bounds = array<i64: 1, 3>}, {transform_indices = @transform_5, window_bounds = array<i64: 2, 1, 3>}]} {
    %c0_i32 = arith.constant 0 : i32
    %0 = arith.cmpi eq, %arg1, %c0_i32 : i32
    %1 = arith.extui %0 : i1 to i32
    %c0_i32_0 = arith.constant 0 : i32
    %2 = arith.cmpi ne, %1, %c0_i32_0 : i32
    scf.if %2 {
      %cst_11 = arith.constant 0.000000e+00 : f32
      %21 = vector.broadcast %cst_11 : f32 to vector<2x32x128xf32>
      %c0_12 = arith.constant 0 : index
      %c0_13 = arith.constant 0 : index
      %c0_14 = arith.constant 0 : index
      %22 = vector.load %arg8[%c0_12, %c0_13, %c0_14] : memref<2x32x128xf32, #tpu.memory_space<vmem>>, vector<2x32x128xf32>
      tpu.vector_store %arg8[%c0_12, %c0_13, %c0_14], %21 {strides = array<i32>} : memref<2x32x128xf32, #tpu.memory_space<vmem>>, vector<2x32x128xf32>,
    } else {
    }
    %c0 = arith.constant 0 : index
    %c0_1 = arith.constant 0 : index
    %c0_2 = arith.constant 0 : index
    %3 = vector.load %arg2[%c0, %c0_1, %c0_2] : memref<2x32x256xf32, #tpu.memory_space<vmem>>, vector<2x32x256xf32>
    %4 = tpu.iota {dimensions = array<i32: 2>} : vector<2x32x256xi32>
    %c256_i32 = arith.constant 256 : i32
    %5 = arith.muli %arg1, %c256_i32 : i32
    %6 = vector.broadcast %5 : i32 to vector<2x32x256xi32>
    %7 = arith.addi %6, %4 : vector<2x32x256xi32>
    %c196_i32 = arith.constant 196 : i32
    %8 = vector.broadcast %c196_i32 : i32 to vector<2x32x256xi32>
    %9 = arith.cmpi slt, %7, %8 : vector<2x32x256xi32>
    %cst = arith.constant 0.000000e+00 : f32
    %10 = vector.broadcast %cst : f32 to vector<2x32x256xf32>
    %11 = arith.select %9, %3, %10 : vector<2x32x256xi1>, vector<2x32x256xf32>
    %12 = vector.extract_strided_slice %11 {offsets = [0, 0, 0], sizes = [2, 32, 128], strides = [1, 1, 1]} : vector<2x32x256xf32> to vector<2x32x128xf32>
    %13 = vector.extract_strided_slice %11 {offsets = [0, 0, 128], sizes = [2, 32, 128], strides = [1, 1, 1]} : vector<2x32x256xf32> to vector<2x32x128xf32>
    %14 = arith.addf %12, %13 : vector<2x32x128xf32>
    %c0_3 = arith.constant 0 : index
    %c0_4 = arith.constant 0 : index
    %c0_5 = arith.constant 0 : index
    %15 = vector.load %arg8[%c0_3, %c0_4, %c0_5] : memref<2x32x128xf32, #tpu.memory_space<vmem>>, vector<2x32x128xf32>
    %16 = arith.addf %15, %14 : vector<2x32x128xf32>
    %c0_6 = arith.constant 0 : index
    %c0_7 = arith.constant 0 : index
    %c0_8 = arith.constant 0 : index
    %17 = vector.load %arg8[%c0_6, %c0_7, %c0_8] : memref<2x32x128xf32, #tpu.memory_space<vmem>>, vector<2x32x128xf32>
    tpu.vector_store %arg8[%c0_6, %c0_7, %c0_8], %16 {strides = array<i32>} : memref<2x32x128xf32, #tpu.memory_space<vmem>>, vector<2x32x128xf32>,
    %c0_i32_9 = arith.constant 0 : i32
    %18 = arith.cmpi eq, %arg1, %c0_i32_9 : i32
    %19 = arith.extui %18 : i1 to i32
    %c0_i32_10 = arith.constant 0 : i32
    %20 = arith.cmpi ne, %19, %c0_i32_10 : i32
    scf.if %20 {
      %c0_11 = arith.constant 0 : index
      %c0_12 = arith.constant 0 : index
      %c0_13 = arith.constant 0 : index
      %21 = vector.load %arg8[%c0_11, %c0_12, %c0_13] : memref<2x32x128xf32, #tpu.memory_space<vmem>>, vector<2x32x128xf32>
      %cst_14 = arith.constant dense<0.000000e+00> : vector<2x32xf32>
      %22 = vector.multi_reduction <add>, %21, %cst_14 [2] : vector<2x32x128xf32> to vector<2x32xf32>
      %cst_15 = arith.constant 0.00510204071 : f32
      %23 = vector.broadcast %cst_15 : f32 to vector<2x32xf32>
      %24 = arith.mulf %22, %23 : vector<2x32xf32>
      %c0_16 = arith.constant 0 : index
      %c0_17 = arith.constant 0 : index
      %25 = vector.load %arg3[%c0_16, %c0_17] : memref<32x128xf32, #tpu.memory_space<vmem>>, vector<32x128xf32>
      %cst_18 = arith.constant dense<0.000000e+00> : vector<2x128xf32>
      %26 = tpu.matmul %24, %25, %cst_18 {dimension_numbers = #tpu.dot_dimension_numbers<[1], [0], [0], [1], [0, 0, 1, 1], [], []>} : vector<2x32xf32>, vector<32x128xf32>, vector<2x128xf32> -> vector<2x128xf32>
      %c0_19 = arith.constant 0 : index
      %c0_20 = arith.constant 0 : index
      %27 = vector.load %arg4[%c0_19, %c0_20] : memref<1x128xf32, #tpu.memory_space<vmem>>, vector<1x128xf32>
      %28 = vector.broadcast %27 : vector<1x128xf32> to vector<2x128xf32>
      %29 = arith.addf %26, %28 : vector<2x128xf32>
      %cst_21 = arith.constant 0.000000e+00 : f32
      %30 = vector.broadcast %cst_21 : f32 to vector<2x128xf32>
      %31 = arith.maximumf %29, %30 : vector<2x128xf32>
      %c0_22 = arith.constant 0 : index
      %c0_23 = arith.constant 0 : index
      %32 = vector.load %arg5[%c0_22, %c0_23] : memref<128x3xf32, #tpu.memory_space<vmem>>, vector<128x3xf32>
      %cst_24 = arith.constant dense<0.000000e+00> : vector<2x3xf32>
      %33 = tpu.matmul %31, %32, %cst_24 {dimension_numbers = #tpu.dot_dimension_numbers<[1], [0], [0], [1], [0, 0, 1, 1], [], []>} : vector<2x128xf32>, vector<128x3xf32>, vector<2x3xf32> -> vector<2x3xf32>
      %c0_25 = arith.constant 0 : index
      %c0_26 = arith.constant 0 : index
      %34 = vector.load %arg6[%c0_25, %c0_26] : memref<1x3xf32, #tpu.memory_space<vmem>>, vector<1x3xf32>
      %35 = vector.broadcast %34 : vector<1x3xf32> to vector<2x3xf32>
      %36 = arith.addf %33, %35 : vector<2x3xf32>
      %37 = vector.shape_cast %36 : vector<2x3xf32> to vector<2x1x3xf32>
      %c0_27 = arith.constant 0 : index
      %c0_28 = arith.constant 0 : index
      %c0_29 = arith.constant 0 : index
      %38 = vector.load %arg7[%c0_27, %c0_28, %c0_29] : memref<2x1x3xf32, #tpu.memory_space<vmem>>, vector<2x1x3xf32>
      tpu.vector_store %arg7[%c0_27, %c0_28, %c0_29], %37 {strides = array<i32>} : memref<2x1x3xf32, #tpu.memory_space<vmem>>, vector<2x1x3xf32>,
    } else {
    }
    return
  }
  func.func @transform_0(%arg0: i32, %arg1: i32) -> (i32, i32, i32) {
    %c0_i32 = arith.constant 0 : i32
    %c0_i32_0 = arith.constant 0 : i32
    return %arg0, %c0_i32, %arg1 : i32, i32, i32
  }
  func.func @transform_1(%arg0: i32, %arg1: i32) -> (i32, i32) {
    %c0_i32 = arith.constant 0 : i32
    %c0_i32_0 = arith.constant 0 : i32
    %c0_i32_1 = arith.constant 0 : i32
    return %c0_i32, %c0_i32_0 : i32, i32
  }
  func.func @transform_2(%arg0: i32, %arg1: i32) -> (i32, i32) {
    %c0_i32 = arith.constant 0 : i32
    %c0_i32_0 = arith.constant 0 : i32
    %c0_i32_1 = arith.constant 0 : i32
    return %c0_i32, %c0_i32_0 : i32, i32
  }
  func.func @transform_3(%arg0: i32, %arg1: i32) -> (i32, i32) {
    %c0_i32 = arith.constant 0 : i32
    %c0_i32_0 = arith.constant 0 : i32
    %c0_i32_1 = arith.constant 0 : i32
    return %c0_i32, %c0_i32_0 : i32, i32
  }
  func.func @transform_4(%arg0: i32, %arg1: i32) -> (i32, i32) {
    %c0_i32 = arith.constant 0 : i32
    %c0_i32_0 = arith.constant 0 : i32
    %c0_i32_1 = arith.constant 0 : i32
    return %c0_i32, %c0_i32_0 : i32, i32
  }
  func.func @transform_5(%arg0: i32, %arg1: i32) -> (i32, i32, i32) {
    %c0_i32 = arith.constant 0 : i32
    %c0_i32_0 = arith.constant 0 : i32
    %c0_i32_1 = arith.constant 0 : i32
    return %arg0, %c0_i32, %c0_i32_0 : i32, i32, i32
  }
}

</mosaic_0001>

<llo_original>
// kernel: tpu_custom_call.1
$region0: #{tpu_custom_call.1}
  #allocation0 [shape = 'u32[]', space=smem, size = 0x4, offset = 0x4, fixed_abs, tag = 'smem constant byte address 0x4 - core index']
  #allocation1 [shape = 'u32[144,128]{1,0:T(1,128)}', space=vmem, size = 0x12000, scoped, tag = 'internal scratch']
  #allocation2 [shape = 'f32[2,32,128]{2,1,0:T(8,128)}', space=vmem, size = 0x8000, scoped, tag = 'scratch operand']
  %s0 = inlined_call_operand.vmem [shape: f32[2,32,196], index: 0, kind: input, shape index: {}]
  %s1 = inlined_call_operand.hbm [shape: f32[32,128], index: 1, kind: input, shape index: {}]
  %s2 = inlined_call_operand.vmem [shape: f32[1,128], index: 2, kind: input, shape index: {}]
  %s3 = inlined_call_operand.vmem [shape: f32[128,3], index: 3, kind: input, shape index: {}]
  %s4 = inlined_call_operand.vmem [shape: f32[1,3], index: 4, kind: input, shape index: {}]
  %s5 = inlined_call_operand.hbm [shape: f32[2,1,3], index: 5, kind: output, shape index: {}]
  %s6 = sld [smem:[#allocation0]]
  $region42: #{tpu_custom_call.1} parent=0
    _
  %s8 = ssub.s32 1, %s6
  %s9 = scalar_select 0, %s8, %s6
  $region1: #{tpu_custom_call.1} parent=0
    #allocation3 [shape = 'u8[16384]{0}', space=vmem, size = 0x4000, scoped, tag = 'input window, operand 1, single buffered']
    #allocation4 [shape = 's32[1]{0}', space=sflag, size = 0x4, scoped, tag = 'scoped memory for tpu_custom_call.1']
    #allocation5 [shape = 's32[1]{0}', space=sflag, size = 0x4, scoped, tag = 'scoped memory for tpu_custom_call.1']
    #allocation6 [shape = 'u8[1024]{0}', space=vmem, size = 0x400, scoped, tag = 'output window, operand 0, single buffered']
    %10 = vsyncpa [#allocation4], 0
    %11 = vsyncpa [#allocation5], 0
    // Predicated region
    $region2: #{tpu_custom_call.1} parent=1 // pred_check
      _
    $region3: #{tpu_custom_call.1} parent=1 // pred_check_branch
      %13 = sbr.rel (0) target = $region5
    $region4: #{tpu_custom_call.1} parent=1 // pred_region
      _
    $region5: #{tpu_custom_call.1} parent=1 // pred_fallthru
      _
    // Predicated region
    $region6: #{tpu_custom_call.1} parent=1 // pred_check
      _
    $region7: #{tpu_custom_call.1} parent=1 // pred_check_branch
      %15 = sbr.rel (0) target = $region9
    $region8: #{tpu_custom_call.1} parent=1 // pred_region
      %s17 = ssub.s32 512, 512
      %18 = vsyncadd [#allocation4], %s17
      %s19 = sshll.u32 [#allocation3], 4
      %s20 = int_to_ptr.vmem [resolvable:$true] %s19
      %25 = dma.hbm_to_vmem [thread:$0]  %s1, 512, %s20, [#allocation4], 128, 128, 8
    $region9: #{tpu_custom_call.1} parent=1 // pred_fallthru
      _
    // Predicated region
    $region10: #{tpu_custom_call.1} parent=1 // pred_check
      _
    $region11: #{tpu_custom_call.1} parent=1 // pred_check_branch
      %27 = sbr.rel (0) target = $region13
    $region12: #{tpu_custom_call.1} parent=1 // pred_region
      _
    $region13: #{tpu_custom_call.1} parent=1 // pred_fallthru
      _
    // Predicated region
    $region14: #{tpu_custom_call.1} parent=1 // pred_check
      _
    $region15: #{tpu_custom_call.1} parent=1 // pred_check_branch
      %29 = sbr.rel (0) target = $region17
    $region16: #{tpu_custom_call.1} parent=1 // pred_region
      _
    $region17: #{tpu_custom_call.1} parent=1 // pred_fallthru
      _
    // Predicated region
    $region18: #{tpu_custom_call.1} parent=1 // pred_check
      _
    $region19: #{tpu_custom_call.1} parent=1 // pred_check_branch
      %31 = sbr.rel (0) target = $region21
    $region20: #{tpu_custom_call.1} parent=1 // pred_region
      _
    $region21: #{tpu_custom_call.1} parent=1 // pred_fallthru
      _
    // Predicated region
    $region22: #{tpu_custom_call.1} parent=1 // pred_check
      _
    $region23: #{tpu_custom_call.1} parent=1 // pred_check_branch
      %33 = sbr.rel (0) target = $region25
    $region24: #{tpu_custom_call.1} parent=1 // pred_region
      %34 = dma.done [#allocation4], 512
    $region25: #{tpu_custom_call.1} parent=1 // pred_fallthru
      _
    %p35 = scmp.eq.s32.totalorder 0, 0
    // Predicated region
    $region26: #{tpu_custom_call.1} parent=1 // pred_check
      %p36 = pneg %p35
    $region27: #{tpu_custom_call.1} parent=1 // pred_check_branch
      %38 = sbr.rel (%p36) target = $region29
    $region28: #{tpu_custom_call.1} parent=1 // pred_region
      %39 = vst [vmem:[#allocation2] sm:$0xff] 0.0
      %40 = vst [vmem:[#allocation2 + $0x8] sm:$0xff] 0.0
      %41 = vst [vmem:[#allocation2 + $0x10] sm:$0xff] 0.0
      %42 = vst [vmem:[#allocation2 + $0x18] sm:$0xff] 0.0
      %43 = vst [vmem:[#allocation2 + $0x20] sm:$0xff] 0.0
      %44 = vst [vmem:[#allocation2 + $0x28] sm:$0xff] 0.0
      %45 = vst [vmem:[#allocation2 + $0x30] sm:$0xff] 0.0
      %46 = vst [vmem:[#allocation2 + $0x38] sm:$0xff] 0.0
    $region29: #{tpu_custom_call.1} parent=1 // pred_fallthru
      _
    %v47 = vld [vmem:[%s0] sm:$0xff]
    %v48 = vld [vmem:[%s0 + $0x8] sm:$0xff]
    %v49 = vld [vmem:[%s0 + $0x10] sm:$0xff]
    %v50 = vld [vmem:[%s0 + $0x18] sm:$0xff]
    %v51 = vld [vmem:[%s0 + $0x20] sm:$0xff]
    %v52 = vld [vmem:[%s0 + $0x28] sm:$0xff]
    %v53 = vld [vmem:[%s0 + $0x30] sm:$0xff]
    %v54 = vld [vmem:[%s0 + $0x38] sm:$0xff]
    %v55 = vld [vmem:[%s0 + $0x40] sm:$0xff]
    %v56 = vld [vmem:[%s0 + $0x48] sm:$0xff]
    %v57 = vld [vmem:[%s0 + $0x50] sm:$0xff]
    %v58 = vld [vmem:[%s0 + $0x58] sm:$0xff]
    %v59 = vld [vmem:[%s0 + $0x60] sm:$0xff]
    %v60 = vld [vmem:[%s0 + $0x68] sm:$0xff]
    %v61 = vld [vmem:[%s0 + $0x70] sm:$0xff]
    %v62 = vld [vmem:[%s0 + $0x78] sm:$0xff]
    %v63 = vlaneseq
    %v64 = vand.u32 %v63, 127
    %v65 = vadd.s32 %v64, 128
    %s66 = smul.u32 0, 256
    %v67 = vstv %s66
    %v68 = vadd.s32 %v67, %v64
    %v69 = vadd.s32 %v67, %v65
    %vm70 = vcmp.lt.s32.totalorder %v68, 196
    %vm71 = vcmp.lt.s32.totalorder %v69, 196
    %v72 = vsel %vm70, %v47, 0.0
    %v73 = vsel %vm71, %v48, 0.0
    %v74 = vsel %vm70, %v49, 0.0
    %v75 = vsel %vm71, %v50, 0.0
    %v76 = vsel %vm70, %v51, 0.0
    %v77 = vsel %vm71, %v52, 0.0
    %v78 = vsel %vm70, %v53, 0.0
    %v79 = vsel %vm71, %v54, 0.0
    %v80 = vsel %vm70, %v55, 0.0
    %v81 = vsel %vm71, %v56, 0.0
    %v82 = vsel %vm70, %v57, 0.0
    %v83 = vsel %vm71, %v58, 0.0
    %v84 = vsel %vm70, %v59, 0.0
    %v85 = vsel %vm71, %v60, 0.0
    %v86 = vsel %vm70, %v61, 0.0
    %v87 = vsel %vm71, %v62, 0.0
    %v88 = vadd.f32 %v72, %v73
    %v89 = vadd.f32 %v74, %v75
    %v90 = vadd.f32 %v76, %v77
    %v91 = vadd.f32 %v78, %v79
    %v92 = vadd.f32 %v80, %v81
    %v93 = vadd.f32 %v82, %v83
    %v94 = vadd.f32 %v84, %v85
    %v95 = vadd.f32 %v86, %v87
    %v96 = vld [vmem:[#allocation2] sm:$0xff]
    %v97 = vld [vmem:[#allocation2 + $0x8] sm:$0xff]
    %v98 = vld [vmem:[#allocation2 + $0x10] sm:$0xff]
    %v99 = vld [vmem:[#allocation2 + $0x18] sm:$0xff]
    %v100 = vld [vmem:[#allocation2 + $0x20] sm:$0xff]
    %v101 = vld [vmem:[#allocation2 + $0x28] sm:$0xff]
    %v102 = vld [vmem:[#allocation2 + $0x30] sm:$0xff]
    %v103 = vld [vmem:[#allocation2 + $0x38] sm:$0xff]
    %v104 = vadd.f32 %v96, %v88
    %v105 = vadd.f32 %v97, %v89
    %v106 = vadd.f32 %v98, %v90
    %v107 = vadd.f32 %v99, %v91
    %v108 = vadd.f32 %v100, %v92
    %v109 = vadd.f32 %v101, %v93
    %v110 = vadd.f32 %v102, %v94
    %v111 = vadd.f32 %v103, %v95
    %112 = vst [vmem:[#allocation2] sm:$0xff] %v104
    %113 = vst [vmem:[#allocation2 + $0x8] sm:$0xff] %v105
    %114 = vst [vmem:[#allocation2 + $0x10] sm:$0xff] %v106
    %115 = vst [vmem:[#allocation2 + $0x18] sm:$0xff] %v107
    %116 = vst [vmem:[#allocation2 + $0x20] sm:$0xff] %v108
    %117 = vst [vmem:[#allocation2 + $0x28] sm:$0xff] %v109
    %118 = vst [vmem:[#allocation2 + $0x30] sm:$0xff] %v110
    %119 = vst [vmem:[#allocation2 + $0x38] sm:$0xff] %v111
    // Predicated region
    $region30: #{tpu_custom_call.1} parent=1 // pred_check
      %p120 = pneg %p35
    $region31: #{tpu_custom_call.1} parent=1 // pred_check_branch
      %122 = sbr.rel (%p120) target = $region33
    $region32: #{tpu_custom_call.1} parent=1 // pred_region
      %v123 = vld [vmem:[#allocation2] sm:$0xff]
      %v124 = vld [vmem:[#allocation2 + $0x8] sm:$0xff]
      %v125 = vld [vmem:[#allocation2 + $0x10] sm:$0xff]
      %v126 = vld [vmem:[#allocation2 + $0x18] sm:$0xff]
      %v127 = vld [vmem:[#allocation2 + $0x20] sm:$0xff]
      %v128 = vld [vmem:[#allocation2 + $0x28] sm:$0xff]
      %v129 = vld [vmem:[#allocation2 + $0x30] sm:$0xff]
      %v130 = vld [vmem:[#allocation2 + $0x38] sm:$0xff]
      %131 = vadd.xlane.f32.xlu0 %v123
      %v132 = vpop.xlane.xlu0 %131
      %133 = vadd.xlane.f32.xlu0 %v124
      %v134 = vpop.xlane.xlu0 %133
      %135 = vadd.xlane.f32.xlu0 %v125
      %v136 = vpop.xlane.xlu0 %135
      %137 = vadd.xlane.f32.xlu0 %v126
      %v138 = vpop.xlane.xlu0 %137
      %139 = vadd.xlane.f32.xlu0 %v127
      %v140 = vpop.xlane.xlu0 %139
      %141 = vadd.xlane.f32.xlu0 %v128
      %v142 = vpop.xlane.xlu0 %141
      %143 = vadd.xlane.f32.xlu0 %v129
      %v144 = vpop.xlane.xlu0 %143
      %145 = vadd.xlane.f32.xlu0 %v130
      %v146 = vpop.xlane.xlu0 %145
      %v147 = vmul.f32 %v132, 0.0051020407
      %v148 = vmul.f32 %v134, 0.0051020407
      %v149 = vmul.f32 %v136, 0.0051020407
      %v150 = vmul.f32 %v138, 0.0051020407
      %v151 = vmul.f32 %v140, 0.0051020407
      %v152 = vmul.f32 %v142, 0.0051020407
      %v153 = vmul.f32 %v144, 0.0051020407
      %v154 = vmul.f32 %v146, 0.0051020407
      %v155 = vld [vmem:[#allocation3] sm:$0xff]
      %v156 = vld [vmem:[#allocation3 + $0x8] sm:$0xff]
      %v157 = vld [vmem:[#allocation3 + $0x10] sm:$0xff]
      %v158 = vld [vmem:[#allocation3 + $0x18] sm:$0xff]
      %v159 = vld [vmem:[%s2] sm:$0x1]
      %v161 = vlaneseq
      %v162 = vshrl.u32 %v161, 7
      %v163 = vsub.s32 0, %v162
      %v164 = vrot.slane %v159, %v163
      %v174 = vlaneseq
      %v175 = vshrl.u32 %v174, 7
      %v176 = vsub.s32 %v64, %v175
      %v177 = vrot.slane %v147, %v176
      %v178 = vadd.s32 %v64, 4294967288
      %v179 = vlaneseq
      %v180 = vshrl.u32 %v179, 7
      %v181 = vsub.s32 %v178, %v180
      %v182 = vrot.slane %v148, %v181
      %vm183 = vcmask 130112
      %v184 = vsel %vm183, %v182, %v177
      %v185 = vadd.s32 %v64, 4294967280
      %v186 = vlaneseq
      %v187 = vshrl.u32 %v186, 7
      %v188 = vsub.s32 %v185, %v187
      %v189 = vrot.slane %v149, %v188
      %vm190 = vcmask 195712
      %v191 = vsel %vm190, %v189, %v184
      %v192 = vadd.s32 %v64, 4294967272
      %v193 = vlaneseq
      %v194 = vshrl.u32 %v193, 7
      %v195 = vsub.s32 %v192, %v194
      %v196 = vrot.slane %v150, %v195
      %vm197 = vcmask 261312
      %v198 = vsel %vm197, %v196, %v191
      %v199 = vlaneseq
      %v200 = vshrl.u32 %v199, 7
      %v201 = vsub.s32 %v64, %v200
      %v202 = vrot.slane %v151, %v201
      %v203 = vlaneseq
      %v204 = vshrl.u32 %v203, 7
      %v205 = vsub.s32 %v178, %v204
      %v206 = vrot.slane %v152, %v205
      %v207 = vsel %vm183, %v206, %v202
      %v208 = vlaneseq
      %v209 = vshrl.u32 %v208, 7
      %v210 = vsub.s32 %v185, %v209
      %v211 = vrot.slane %v153, %v210
      %v212 = vsel %vm190, %v211, %v207
      %v213 = vlaneseq
      %v214 = vshrl.u32 %v213, 7
      %v215 = vsub.s32 %v192, %v214
      %v216 = vrot.slane %v154, %v215
      %v217 = vsel %vm197, %v216, %v212
      %vm218 = vcmask 1041409
      %v219 = vsel %vm218, %v217, %v198
      %vm220 = vcmask 261120
      %v221 = vsel %vm220, %v219, 0
      %223 = vmatprep.subr.mxu0 0.0
      %224 = vmatpush1.msra.mxu0 0.0
      %225 = vmatprep.subr.mxu0 0.0
      %226 = vmatpush1.msra.mxu0 0.0
      %227 = vmatprep.subr.mxu0 0.0
      %228 = vmatpush1.msra.mxu0 0.0
      %229 = vmatprep.subr.mxu0 0.0
      %230 = vmatpush1.msra.mxu0 0.0
      %231 = vmatprep.subr.mxu0 0.0
      %232 = vmatpush1.msra.mxu0 0.0
      %233 = vmatprep.subr.mxu0 0.0
      %234 = vmatpush1.msra.mxu0 0.0
      %235 = vmatprep.subr.mxu0 0.0
      %236 = vmatpush1.msra.mxu0 0.0
      %237 = vmatprep.subr.mxu0 0.0
      %238 = vmatpush1.msra.mxu0 0.0
      %239 = vmatprep.subr.mxu0 0.0
      %240 = vmatpush1.msra.mxu0 0.0
      %241 = vmatprep.subr.mxu0 0.0
      %242 = vmatpush1.msra.mxu0 0.0
      %243 = vmatprep.subr.mxu0 0.0
      %244 = vmatpush1.msra.mxu0 0.0
      %245 = vmatprep.subr.mxu0 0.0
      %246 = vmatpush1.msra.mxu0 0.0
      %247 = vmatprep.subr.mxu0 0.0
      %248 = vmatpush1.msra.mxu0 %v158
      %249 = vmatprep.subr.mxu0 0.0
      %250 = vmatpush1.msra.mxu0 %v157
      %251 = vmatprep.subr.mxu0 0.0
      %252 = vmatpush1.msra.mxu0 %v156
      %253 = vmatprep.subr.mxu0 0.0
      %254 = vmatpush1.msra.mxu0 %v155
      %255 = vmatprep.subr.mxu0 0.0
      %256 = vmatpush2.msra.mxu0 0.0
      %257 = vmatprep.subr.mxu0 0.0
      %258 = vmatpush2.msra.mxu0 0.0
      %259 = vmatprep.subr.mxu0 0.0
      %260 = vmatpush2.msra.mxu0 0.0
      %261 = vmatprep.subr.mxu0 0.0
      %262 = vmatpush2.msra.mxu0 0.0
      %263 = vmatprep.subr.mxu0 0.0
      %264 = vmatpush2.msra.mxu0 0.0
      %265 = vmatprep.subr.mxu0 0.0
      %266 = vmatpush2.msra.mxu0 0.0
      %267 = vmatprep.subr.mxu0 0.0
      %268 = vmatpush2.msra.mxu0 0.0
      %269 = vmatprep.subr.mxu0 0.0
      %270 = vmatpush2.msra.mxu0 0.0
      %271 = vmatprep.subr.mxu0 0.0
      %272 = vmatpush2.msra.mxu0 0.0
      %273 = vmatprep.subr.mxu0 0.0
      %274 = vmatpush2.msra.mxu0 0.0
      %275 = vmatprep.subr.mxu0 0.0
      %276 = vmatpush2.msra.mxu0 0.0
      %277 = vmatprep.subr.mxu0 0.0
      %278 = vmatpush2.msra.mxu0 0.0
      %279 = vmatprep.subr.mxu0 0.0
      %280 = vmatpush2.msra.mxu0 0.0
      %281 = vmatprep.subr.mxu0 0.0
      %282 = vmatpush2.msra.mxu0 0.0
      %283 = vmatprep.subr.mxu0 0.0
      %284 = vmatpush2.msra.mxu0 0.0
      %285 = vmatprep.subr.mxu0 0.0
      %286 = vmatpush2.msra.mxu0 0.0
      %287 = vmatprep.mubr.f32.mxu0 0.0
      %288 = vmatmul.mubr.f32.gmra.mxu0 %v221
      %v289 = vpop.f32.mrf.mxu0
      %v290 = vadd.f32 %v164, %v289
      %v291 = vpop.f32.mrf.mxu0
      %292 = vdwg.mxu0
      %v293 = vmax.f32 %v290, 0.0
      %v294 = vld [vmem:[%s3] sm:$0xff]
      %v295 = vld [vmem:[%s3 + $0x8] sm:$0xff]
      %v296 = vld [vmem:[%s3 + $0x10] sm:$0xff]
      %v297 = vld [vmem:[%s3 + $0x18] sm:$0xff]
      %v298 = vld [vmem:[%s3 + $0x20] sm:$0xff]
      %v299 = vld [vmem:[%s3 + $0x28] sm:$0xff]
      %v300 = vld [vmem:[%s3 + $0x30] sm:$0xff]
      %v301 = vld [vmem:[%s3 + $0x38] sm:$0xff]
      %v302 = vld [vmem:[%s3 + $0x40] sm:$0xff]
      %v303 = vld [vmem:[%s3 + $0x48] sm:$0xff]
      %v304 = vld [vmem:[%s3 + $0x50] sm:$0xff]
      %v305 = vld [vmem:[%s3 + $0x58] sm:$0xff]
      %v306 = vld [vmem:[%s3 + $0x60] sm:$0xff]
      %v307 = vld [vmem:[%s3 + $0x68] sm:$0xff]
      %v308 = vld [vmem:[%s3 + $0x70] sm:$0xff]
      %v309 = vld [vmem:[%s3 + $0x78] sm:$0xff]
      %v310 = vld [vmem:[%s4] sm:$0x1]
      %v312 = vlaneseq
      %v313 = vshrl.u32 %v312, 7
      %v314 = vsub.s32 0, %v313
      %v315 = vrot.slane %v310, %v314
      %317 = vmatprep.subr.mxu0 0.0
      %318 = vmatpush1.msra.mxu0 %v309
      %319 = vmatprep.subr.mxu0 0.0
      %320 = vmatpush1.msra.mxu0 %v308
      %321 = vmatprep.subr.mxu0 0.0
      %322 = vmatpush1.msra.mxu0 %v307
      %323 = vmatprep.subr.mxu0 0.0
      %324 = vmatpush1.msra.mxu0 %v306
      %325 = vmatprep.subr.mxu0 0.0
      %326 = vmatpush1.msra.mxu0 %v305
      %327 = vmatprep.subr.mxu0 0.0
      %328 = vmatpush1.msra.mxu0 %v304
      %329 = vmatprep.subr.mxu0 0.0
      %330 = vmatpush1.msra.mxu0 %v303
      %331 = vmatprep.subr.mxu0 0.0
      %332 = vmatpush1.msra.mxu0 %v302
      %333 = vmatprep.subr.mxu0 0.0
      %334 = vmatpush1.msra.mxu0 %v301
      %335 = vmatprep.subr.mxu0 0.0
      %336 = vmatpush1.msra.mxu0 %v300
      %337 = vmatprep.subr.mxu0 0.0
      %338 = vmatpush1.msra.mxu0 %v299
      %339 = vmatprep.subr.mxu0 0.0
      %340 = vmatpush1.msra.mxu0 %v298
      %341 = vmatprep.subr.mxu0 0.0
      %342 = vmatpush1.msra.mxu0 %v297
      %343 = vmatprep.subr.mxu0 0.0
      %344 = vmatpush1.msra.mxu0 %v296
      %345 = vmatprep.subr.mxu0 0.0
      %346 = vmatpush1.msra.mxu0 %v295
      %347 = vmatprep.subr.mxu0 0.0
      %348 = vmatpush1.msra.mxu0 %v294
      %349 = vmatprep.subr.mxu0 0.0
      %350 = vmatpush2.msra.mxu0 0.0
      %351 = vmatprep.subr.mxu0 0.0
      %352 = vmatpush2.msra.mxu0 0.0
      %353 = vmatprep.subr.mxu0 0.0
      %354 = vmatpush2.msra.mxu0 0.0
      %355 = vmatprep.subr.mxu0 0.0
      %356 = vmatpush2.msra.mxu0 0.0
      %357 = vmatprep.subr.mxu0 0.0
      %358 = vmatpush2.msra.mxu0 0.0
      %359 = vmatprep.subr.mxu0 0.0
      %360 = vmatpush2.msra.mxu0 0.0
      %361 = vmatprep.subr.mxu0 0.0
      %362 = vmatpush2.msra.mxu0 0.0
      %363 = vmatprep.subr.mxu0 0.0
      %364 = vmatpush2.msra.mxu0 0.0
      %365 = vmatprep.subr.mxu0 0.0
      %366 = vmatpush2.msra.mxu0 0.0
      %367 = vmatprep.subr.mxu0 0.0
      %368 = vmatpush2.msra.mxu0 0.0
      %369 = vmatprep.subr.mxu0 0.0
      %370 = vmatpush2.msra.mxu0 0.0
      %371 = vmatprep.subr.mxu0 0.0
      %372 = vmatpush2.msra.mxu0 0.0
      %373 = vmatprep.subr.mxu0 0.0
      %374 = vmatpush2.msra.mxu0 0.0
      %375 = vmatprep.subr.mxu0 0.0
      %376 = vmatpush2.msra.mxu0 0.0
      %377 = vmatprep.subr.mxu0 0.0
      %378 = vmatpush2.msra.mxu0 0.0
      %379 = vmatprep.subr.mxu0 0.0
      %380 = vmatpush2.msra.mxu0 0.0
      %381 = vmatprep.mubr.f32.mxu0 0.0
      %382 = vmatmul.mubr.f32.gmra.mxu0 %v293
      %v383 = vpop.f32.mrf.mxu0
      %v384 = vadd.f32 %v315, %v383
      %v385 = vpop.f32.mrf.mxu0
      %386 = vdwg.mxu0
      %v389 = vunpack.c.l.s4 1966171168
      %v390 = vunpack.c.0.s8 %v389
      %v391 = vlaneseq
      %v392 = vshrl.u32 %v391, 7
      %v393 = vsub.s32 %v390, %v392
      %v394 = vrot.slane %v384, %v393
      %v395 = vcombine.high %v394, %v394
      %v397 = vunpack.c.l.s4 1966171168
      %v398 = vunpack.c.0.s8 %v397
      %v399 = vlaneseq
      %v400 = vshrl.u32 %v399, 7
      %v401 = vsub.s32 %v398, %v400
      %v402 = vrot.slane %v394, %v401
      %v404 = vunpack.c.l.s4 1966171168
      %v405 = vunpack.c.0.s8 %v404
      %v406 = vlaneseq
      %v407 = vshrl.u32 %v406, 7
      %v408 = vsub.s32 %v405, %v407
      %v409 = vrot.slane %v395, %v408
      %vm412 = vcmask 16384
      %413 = vst.msk [vmem:[#allocation6] sm:$0x1] %vm412, %v402
      %414 = vst.msk [vmem:[#allocation6 + $0x1] sm:$0x1] %vm412, %v409
    $region33: #{tpu_custom_call.1} parent=1 // pred_fallthru
      _
    // Predicated region
    $region34: #{tpu_custom_call.1} parent=1 // pred_check
      _
    $region35: #{tpu_custom_call.1} parent=1 // pred_check_branch
      %416 = sbr.rel (0) target = $region37
    $region36: #{tpu_custom_call.1} parent=1 // pred_region
      %s418 = ssub.s32 32, 32
      %419 = vsyncadd [#allocation5], %s418
      %s420 = sshll.u32 [#allocation6], 4
      %s421 = int_to_ptr.vmem [resolvable:$true] %s420
      %426 = dma.vmem_to_hbm [thread:$0]  %s421, 32, %s5, [#allocation5], 16, 16, 1
    $region37: #{tpu_custom_call.1} parent=1 // pred_fallthru
      _
    // Predicated region
    $region38: #{tpu_custom_call.1} parent=1 // pred_check
      _
    $region39: #{tpu_custom_call.1} parent=1 // pred_check_branch
      %428 = sbr.rel (0) target = $region41
    $region40: #{tpu_custom_call.1} parent=1 // pred_region
      %429 = dma.done [#allocation5], 32
    $region41: #{tpu_custom_call.1} parent=1 // pred_fallthru
      _
    %430 = vsyncpa [#allocation4], 1
    %431 = vsyncpa [#allocation5], 1

// kernel: tpu_custom_call.1
$region0: #{tpu_custom_call.1}
  #allocation0 [shape = 'u32[]', space=smem, size = 0x4, offset = 0x4, fixed_abs, tag = 'smem constant byte address 0x4 - core index']
  #allocation1 [shape = 'u32[144,128]{1,0:T(1,128)}', space=vmem, size = 0x12000, scoped, tag = 'internal scratch']
  #allocation2 [shape = 'f32[2,32,128]{2,1,0:T(8,128)}', space=vmem, size = 0x8000, scoped, tag = 'scratch operand']
  %s0 = inlined_call_operand.vmem [shape: f32[2,32,196], index: 0, kind: input, shape index: {}]
  %s1 = inlined_call_operand.hbm [shape: f32[32,128], index: 1, kind: input, shape index: {}]
  %s2 = inlined_call_operand.vmem [shape: f32[1,128], index: 2, kind: input, shape index: {}]
  %s3 = inlined_call_operand.vmem [shape: f32[128,3], index: 3, kind: input, shape index: {}]
  %s4 = inlined_call_operand.vmem [shape: f32[1,3], index: 4, kind: input, shape index: {}]
  %s5 = inlined_call_operand.hbm [shape: f32[2,1,3], index: 5, kind: output, shape index: {}]
  %s6 = sld [smem:[#allocation0]]
  $region42: #{tpu_custom_call.1} parent=0
    _
  %s8 = ssub.s32 1, %s6
  %s9 = scalar_select 0, %s8, %s6
  $region1: #{tpu_custom_call.1} parent=0
    #allocation3 [shape = 'u8[16384]{0}', space=vmem, size = 0x4000, scoped, tag = 'input window, operand 1, single buffered']
    #allocation4 [shape = 's32[1]{0}', space=sflag, size = 0x4, scoped, tag = 'scoped memory for tpu_custom_call.1']
    #allocation5 [shape = 's32[1]{0}', space=sflag, size = 0x4, scoped, tag = 'scoped memory for tpu_custom_call.1']
    #allocation6 [shape = 'u8[1024]{0}', space=vmem, size = 0x400, scoped, tag = 'output window, operand 0, single buffered']
    %10 = vsyncpa [#allocation4], 0
    %11 = vsyncpa [#allocation5], 0
    // Predicated region
    $region2: #{tpu_custom_call.1} parent=1 // pred_check
      _
    $region3: #{tpu_custom_call.1} parent=1 // pred_check_branch
      %13 = sbr.rel (0) target = $region5
    $region4: #{tpu_custom_call.1} parent=1 // pred_region
      _
    $region5: #{tpu_custom_call.1} parent=1 // pred_fallthru
      _
    // Predicated region
    $region6: #{tpu_custom_call.1} parent=1 // pred_check
      _
    $region7: #{tpu_custom_call.1} parent=1 // pred_check_branch
      %15 = sbr.rel (0) target = $region9
    $region8: #{tpu_custom_call.1} parent=1 // pred_region
      %s17 = ssub.s32 512, 512
      %18 = vsyncadd [#allocation4], %s17
      %s19 = sshll.u32 [#allocation3], 4
      %s20 = int_to_ptr.vmem [resolvable:$true] %s19
      %25 = dma.hbm_to_vmem [thread:$0]  %s1, 512, %s20, [#allocation4], 128, 128, 8
    $region9: #{tpu_custom_call.1} parent=1 // pred_fallthru
      _
    // Predicated region
    $region10: #{tpu_custom_call.1} parent=1 // pred_check
      _
    $region11: #{tpu_custom_call.1} parent=1 // pred_check_branch
      %27 = sbr.rel (0) target = $region13
    $region12: #{tpu_custom_call.1} parent=1 // pred_region
      _
    $region13: #{tpu_custom_call.1} parent=1 // pred_fallthru
      _
    // Predicated region
    $region14: #{tpu_custom_call.1} parent=1 // pred_check
      _
    $region15: #{tpu_custom_call.1} parent=1 // pred_check_branch
      %29 = sbr.rel (0) target = $region17
    $region16: #{tpu_custom_call.1} parent=1 // pred_region
      _
    $region17: #{tpu_custom_call.1} parent=1 // pred_fallthru
      _
    // Predicated region
    $region18: #{tpu_custom_call.1} parent=1 // pred_check
      _
    $region19: #{tpu_custom_call.1} parent=1 // pred_check_branch
      %31 = sbr.rel (0) target = $region21
    $region20: #{tpu_custom_call.1} parent=1 // pred_region
      _
    $region21: #{tpu_custom_call.1} parent=1 // pred_fallthru
      _
    // Predicated region
    $region22: #{tpu_custom_call.1} parent=1 // pred_check
      _
    $region23: #{tpu_custom_call.1} parent=1 // pred_check_branch
      %33 = sbr.rel (0) target = $region25
    $region24: #{tpu_custom_call.1} parent=1 // pred_region
      %34 = dma.done [#allocation4], 512
    $region25: #{tpu_custom_call.1} parent=1 // pred_fallthru
      _
    %p35 = scmp.eq.s32.totalorder 0, 0
    // Predicated region
    $region26: #{tpu_custom_call.1} parent=1 // pred_check
      %p36 = pneg %p35
    $region27: #{tpu_custom_call.1} parent=1 // pred_check_branch
      %38 = sbr.rel (%p36) target = $region29
    $region28: #{tpu_custom_call.1} parent=1 // pred_region
      %39 = vst [vmem:[#allocation2] sm:$0xff] 0.0
      %40 = vst [vmem:[#allocation2 + $0x8] sm:$0xff] 0.0
      %41 = vst [vmem:[#allocation2 + $0x10] sm:$0xff] 0.0
      %42 = vst [vmem:[#allocation2 + $0x18] sm:$0xff] 0.0
      %43 = vst [vmem:[#allocation2 + $0x20] sm:$0xff] 0.0
      %44 = vst [vmem:[#allocation2 + $0x28] sm:$0xff] 0.0
      %45 = vst [vmem:[#allocation2 + $0x30] sm:$0xff] 0.0
      %46 = vst [vmem:[#allocation2 + $0x38] sm:$0xff] 0.0
    $region29: #{tpu_custom_call.1} parent=1 // pred_fallthru
      _
    %v47 = vld [vmem:[%s0] sm:$0xff]
    %v48 = vld [vmem:[%s0 + $0x8] sm:$0xff]
    %v49 = vld [vmem:[%s0 + $0x10] sm:$0xff]
    %v50 = vld [vmem:[%s0 + $0x18] sm:$0xff]
    %v51 = vld [vmem:[%s0 + $0x20] sm:$0xff]
    %v52 = vld [vmem:[%s0 + $0x28] sm:$0xff]
    %v53 = vld [vmem:[%s0 + $0x30] sm:$0xff]
    %v54 = vld [vmem:[%s0 + $0x38] sm:$0xff]
    %v55 = vld [vmem:[%s0 + $0x40] sm:$0xff]
    %v56 = vld [vmem:[%s0 + $0x48] sm:$0xff]
    %v57 = vld [vmem:[%s0 + $0x50] sm:$0xff]
    %v58 = vld [vmem:[%s0 + $0x58] sm:$0xff]
    %v59 = vld [vmem:[%s0 + $0x60] sm:$0xff]
    %v60 = vld [vmem:[%s0 + $0x68] sm:$0xff]
    %v61 = vld [vmem:[%s0 + $0x70] sm:$0xff]
    %v62 = vld [vmem:[%s0 + $0x78] sm:$0xff]
    %v63 = vlaneseq
    %v64 = vand.u32 %v63, 127
    %v65 = vadd.s32 %v64, 128
    %s66 = smul.u32 0, 256
    %v67 = vstv %s66
    %v68 = vadd.s32 %v67, %v64
    %v69 = vadd.s32 %v67, %v65
    %vm70 = vcmp.lt.s32.totalorder %v68, 196
    %vm71 = vcmp.lt.s32.totalorder %v69, 196
    %v72 = vsel %vm70, %v47, 0.0
    %v73 = vsel %vm71, %v48, 0.0
    %v74 = vsel %vm70, %v49, 0.0
    %v75 = vsel %vm71, %v50, 0.0
    %v76 = vsel %vm70, %v51, 0.0
    %v77 = vsel %vm71, %v52, 0.0
    %v78 = vsel %vm70, %v53, 0.0
    %v79 = vsel %vm71, %v54, 0.0
    %v80 = vsel %vm70, %v55, 0.0
    %v81 = vsel %vm71, %v56, 0.0
    %v82 = vsel %vm70, %v57, 0.0
    %v83 = vsel %vm71, %v58, 0.0
    %v84 = vsel %vm70, %v59, 0.0
    %v85 = vsel %vm71, %v60, 0.0
    %v86 = vsel %vm70, %v61, 0.0
    %v87 = vsel %vm71, %v62, 0.0
    %v88 = vadd.f32 %v72, %v73
    %v89 = vadd.f32 %v74, %v75
    %v90 = vadd.f32 %v76, %v77
    %v91 = vadd.f32 %v78, %v79
    %v92 = vadd.f32 %v80, %v81
    %v93 = vadd.f32 %v82, %v83
    %v94 = vadd.f32 %v84, %v85
    %v95 = vadd.f32 %v86, %v87
    %v96 = vld [vmem:[#allocation2] sm:$0xff]
    %v97 = vld [vmem:[#allocation2 + $0x8] sm:$0xff]
    %v98 = vld [vmem:[#allocation2 + $0x10] sm:$0xff]
    %v99 = vld [vmem:[#allocation2 + $0x18] sm:$0xff]
    %v100 = vld [vmem:[#allocation2 + $0x20] sm:$0xff]
    %v101 = vld [vmem:[#allocation2 + $0x28] sm:$0xff]
    %v102 = vld [vmem:[#allocation2 + $0x30] sm:$0xff]
    %v103 = vld [vmem:[#allocation2 + $0x38] sm:$0xff]
    %v104 = vadd.f32 %v96, %v88
    %v105 = vadd.f32 %v97, %v89
    %v106 = vadd.f32 %v98, %v90
    %v107 = vadd.f32 %v99, %v91
    %v108 = vadd.f32 %v100, %v92
    %v109 = vadd.f32 %v101, %v93
    %v110 = vadd.f32 %v102, %v94
    %v111 = vadd.f32 %v103, %v95
    %112 = vst [vmem:[#allocation2] sm:$0xff] %v104
    %113 = vst [vmem:[#allocation2 + $0x8] sm:$0xff] %v105
    %114 = vst [vmem:[#allocation2 + $0x10] sm:$0xff] %v106
    %115 = vst [vmem:[#allocation2 + $0x18] sm:$0xff] %v107
    %116 = vst [vmem:[#allocation2 + $0x20] sm:$0xff] %v108
    %117 = vst [vmem:[#allocation2 + $0x28] sm:$0xff] %v109
    %118 = vst [vmem:[#allocation2 + $0x30] sm:$0xff] %v110
    %119 = vst [vmem:[#allocation2 + $0x38] sm:$0xff] %v111
    // Predicated region
    $region30: #{tpu_custom_call.1} parent=1 // pred_check
      %p120 = pneg %p35
    $region31: #{tpu_custom_call.1} parent=1 // pred_check_branch
      %122 = sbr.rel (%p120) target = $region33
    $region32: #{tpu_custom_call.1} parent=1 // pred_region
      %v123 = vld [vmem:[#allocation2] sm:$0xff]
      %v124 = vld [vmem:[#allocation2 + $0x8] sm:$0xff]
      %v125 = vld [vmem:[#allocation2 + $0x10] sm:$0xff]
      %v126 = vld [vmem:[#allocation2 + $0x18] sm:$0xff]
      %v127 = vld [vmem:[#allocation2 + $0x20] sm:$0xff]
      %v128 = vld [vmem:[#allocation2 + $0x28] sm:$0xff]
      %v129 = vld [vmem:[#allocation2 + $0x30] sm:$0xff]
      %v130 = vld [vmem:[#allocation2 + $0x38] sm:$0xff]
      %131 = vadd.xlane.f32.xlu0 %v123
      %v132 = vpop.xlane.xlu0 %131
      %133 = vadd.xlane.f32.xlu0 %v124
      %v134 = vpop.xlane.xlu0 %133
      %135 = vadd.xlane.f32.xlu0 %v125
      %v136 = vpop.xlane.xlu0 %135
      %137 = vadd.xlane.f32.xlu0 %v126
      %v138 = vpop.xlane.xlu0 %137
      %139 = vadd.xlane.f32.xlu0 %v127
      %v140 = vpop.xlane.xlu0 %139
      %141 = vadd.xlane.f32.xlu0 %v128
      %v142 = vpop.xlane.xlu0 %141
      %143 = vadd.xlane.f32.xlu0 %v129
      %v144 = vpop.xlane.xlu0 %143
      %145 = vadd.xlane.f32.xlu0 %v130
      %v146 = vpop.xlane.xlu0 %145
      %v147 = vmul.f32 %v132, 0.0051020407
      %v148 = vmul.f32 %v134, 0.0051020407
      %v149 = vmul.f32 %v136, 0.0051020407
      %v150 = vmul.f32 %v138, 0.0051020407
      %v151 = vmul.f32 %v140, 0.0051020407
      %v152 = vmul.f32 %v142, 0.0051020407
      %v153 = vmul.f32 %v144, 0.0051020407
      %v154 = vmul.f32 %v146, 0.0051020407
      %v155 = vld [vmem:[#allocation3] sm:$0xff]
      %v156 = vld [vmem:[#allocation3 + $0x8] sm:$0xff]
      %v157 = vld [vmem:[#allocation3 + $0x10] sm:$0xff]
      %v158 = vld [vmem:[#allocation3 + $0x18] sm:$0xff]
      %v159 = vld [vmem:[%s2] sm:$0x1]
      %v161 = vlaneseq
      %v162 = vshrl.u32 %v161, 7
      %v163 = vsub.s32 0, %v162
      %v164 = vrot.slane %v159, %v163
      %v174 = vlaneseq
      %v175 = vshrl.u32 %v174, 7
      %v176 = vsub.s32 %v64, %v175
      %v177 = vrot.slane %v147, %v176
      %v178 = vadd.s32 %v64, 4294967288
      %v179 = vlaneseq
      %v180 = vshrl.u32 %v179, 7
      %v181 = vsub.s32 %v178, %v180
      %v182 = vrot.slane %v148, %v181
      %vm183 = vcmask 130112
      %v184 = vsel %vm183, %v182, %v177
      %v185 = vadd.s32 %v64, 4294967280
      %v186 = vlaneseq
      %v187 = vshrl.u32 %v186, 7
      %v188 = vsub.s32 %v185, %v187
      %v189 = vrot.slane %v149, %v188
      %vm190 = vcmask 195712
      %v191 = vsel %vm190, %v189, %v184
      %v192 = vadd.s32 %v64, 4294967272
      %v193 = vlaneseq
      %v194 = vshrl.u32 %v193, 7
      %v195 = vsub.s32 %v192, %v194
      %v196 = vrot.slane %v150, %v195
      %vm197 = vcmask 261312
      %v198 = vsel %vm197, %v196, %v191
      %v199 = vlaneseq
      %v200 = vshrl.u32 %v199, 7
      %v201 = vsub.s32 %v64, %v200
      %v202 = vrot.slane %v151, %v201
      %v203 = vlaneseq
      %v204 = vshrl.u32 %v203, 7
      %v205 = vsub.s32 %v178, %v204
      %v206 = vrot.slane %v152, %v205
      %v207 = vsel %vm183, %v206, %v202
      %v208 = vlaneseq
      %v209 = vshrl.u32 %v208, 7
      %v210 = vsub.s32 %v185, %v209
      %v211 = vrot.slane %v153, %v210
      %v212 = vsel %vm190, %v211, %v207
      %v213 = vlaneseq
      %v214 = vshrl.u32 %v213, 7
      %v215 = vsub.s32 %v192, %v214
      %v216 = vrot.slane %v154, %v215
      %v217 = vsel %vm197, %v216, %v212
      %vm218 = vcmask 1041409
      %v219 = vsel %vm218, %v217, %v198
      %vm220 = vcmask 261120
      %v221 = vsel %vm220, %v219, 0
      %223 = vmatprep.subr.mxu0 0.0
      %224 = vmatpush1.msra.mxu0 0.0
      %225 = vmatprep.subr.mxu0 0.0
      %226 = vmatpush1.msra.mxu0 0.0
      %227 = vmatprep.subr.mxu0 0.0
      %228 = vmatpush1.msra.mxu0 0.0
      %229 = vmatprep.subr.mxu0 0.0
      %230 = vmatpush1.msra.mxu0 0.0
      %231 = vmatprep.subr.mxu0 0.0
      %232 = vmatpush1.msra.mxu0 0.0
      %233 = vmatprep.subr.mxu0 0.0
      %234 = vmatpush1.msra.mxu0 0.0
      %235 = vmatprep.subr.mxu0 0.0
      %236 = vmatpush1.msra.mxu0 0.0
      %237 = vmatprep.subr.mxu0 0.0
      %238 = vmatpush1.msra.mxu0 0.0
      %239 = vmatprep.subr.mxu0 0.0
      %240 = vmatpush1.msra.mxu0 0.0
      %241 = vmatprep.subr.mxu0 0.0
      %242 = vmatpush1.msra.mxu0 0.0
      %243 = vmatprep.subr.mxu0 0.0
      %244 = vmatpush1.msra.mxu0 0.0
      %245 = vmatprep.subr.mxu0 0.0
      %246 = vmatpush1.msra.mxu0 0.0
      %247 = vmatprep.subr.mxu0 0.0
      %248 = vmatpush1.msra.mxu0 %v158
      %249 = vmatprep.subr.mxu0 0.0
      %250 = vmatpush1.msra.mxu0 %v157
      %251 = vmatprep.subr.mxu0 0.0
      %252 = vmatpush1.msra.mxu0 %v156
      %253 = vmatprep.subr.mxu0 0.0
      %254 = vmatpush1.msra.mxu0 %v155
      %255 = vmatprep.subr.mxu0 0.0
      %256 = vmatpush2.msra.mxu0 0.0
      %257 = vmatprep.subr.mxu0 0.0
      %258 = vmatpush2.msra.mxu0 0.0
      %259 = vmatprep.subr.mxu0 0.0
      %260 = vmatpush2.msra.mxu0 0.0
      %261 = vmatprep.subr.mxu0 0.0
      %262 = vmatpush2.msra.mxu0 0.0
      %263 = vmatprep.subr.mxu0 0.0
      %264 = vmatpush2.msra.mxu0 0.0
      %265 = vmatprep.subr.mxu0 0.0
      %266 = vmatpush2.msra.mxu0 0.0
      %267 = vmatprep.subr.mxu0 0.0
      %268 = vmatpush2.msra.mxu0 0.0
      %269 = vmatprep.subr.mxu0 0.0
      %270 = vmatpush2.msra.mxu0 0.0
      %271 = vmatprep.subr.mxu0 0.0
      %272 = vmatpush2.msra.mxu0 0.0
      %273 = vmatprep.subr.mxu0 0.0
      %274 = vmatpush2.msra.mxu0 0.0
      %275 = vmatprep.subr.mxu0 0.0
      %276 = vmatpush2.msra.mxu0 0.0
      %277 = vmatprep.subr.mxu0 0.0
      %278 = vmatpush2.msra.mxu0 0.0
      %279 = vmatprep.subr.mxu0 0.0
      %280 = vmatpush2.msra.mxu0 0.0
      %281 = vmatprep.subr.mxu0 0.0
      %282 = vmatpush2.msra.mxu0 0.0
      %283 = vmatprep.subr.mxu0 0.0
      %284 = vmatpush2.msra.mxu0 0.0
      %285 = vmatprep.subr.mxu0 0.0
      %286 = vmatpush2.msra.mxu0 0.0
      %287 = vmatprep.mubr.f32.mxu0 0.0
      %288 = vmatmul.mubr.f32.gmra.mxu0 %v221
      %v289 = vpop.f32.mrf.mxu0
      %v290 = vadd.f32 %v164, %v289
      %v291 = vpop.f32.mrf.mxu0
      %292 = vdwg.mxu0
      %v293 = vmax.f32 %v290, 0.0
      %v294 = vld [vmem:[%s3] sm:$0xff]
      %v295 = vld [vmem:[%s3 + $0x8] sm:$0xff]
      %v296 = vld [vmem:[%s3 + $0x10] sm:$0xff]
      %v297 = vld [vmem:[%s3 + $0x18] sm:$0xff]
      %v298 = vld [vmem:[%s3 + $0x20] sm:$0xff]
      %v299 = vld [vmem:[%s3 + $0x28] sm:$0xff]
      %v300 = vld [vmem:[%s3 + $0x30] sm:$0xff]
      %v301 = vld [vmem:[%s3 + $0x38] sm:$0xff]
      %v302 = vld [vmem:[%s3 + $0x40] sm:$0xff]
      %v303 = vld [vmem:[%s3 + $0x48] sm:$0xff]
      %v304 = vld [vmem:[%s3 + $0x50] sm:$0xff]
      %v305 = vld [vmem:[%s3 + $0x58] sm:$0xff]
      %v306 = vld [vmem:[%s3 + $0x60] sm:$0xff]
      %v307 = vld [vmem:[%s3 + $0x68] sm:$0xff]
      %v308 = vld [vmem:[%s3 + $0x70] sm:$0xff]
      %v309 = vld [vmem:[%s3 + $0x78] sm:$0xff]
      %v310 = vld [vmem:[%s4] sm:$0x1]
      %v312 = vlaneseq
      %v313 = vshrl.u32 %v312, 7
      %v314 = vsub.s32 0, %v313
      %v315 = vrot.slane %v310, %v314
      %317 = vmatprep.subr.mxu0 0.0
      %318 = vmatpush1.msra.mxu0 %v309
      %319 = vmatprep.subr.mxu0 0.0
      %320 = vmatpush1.msra.mxu0 %v308
      %321 = vmatprep.subr.mxu0 0.0
      %322 = vmatpush1.msra.mxu0 %v307
      %323 = vmatprep.subr.mxu0 0.0
      %324 = vmatpush1.msra.mxu0 %v306
      %325 = vmatprep.subr.mxu0 0.0
      %326 = vmatpush1.msra.mxu0 %v305
      %327 = vmatprep.subr.mxu0 0.0
      %328 = vmatpush1.msra.mxu0 %v304
      %329 = vmatprep.subr.mxu0 0.0
      %330 = vmatpush1.msra.mxu0 %v303
      %331 = vmatprep.subr.mxu0 0.0
      %332 = vmatpush1.msra.mxu0 %v302
      %333 = vmatprep.subr.mxu0 0.0
      %334 = vmatpush1.msra.mxu0 %v301
      %335 = vmatprep.subr.mxu0 0.0
      %336 = vmatpush1.msra.mxu0 %v300
      %337 = vmatprep.subr.mxu0 0.0
      %338 = vmatpush1.msra.mxu0 %v299
      %339 = vmatprep.subr.mxu0 0.0
      %340 = vmatpush1.msra.mxu0 %v298
      %341 = vmatprep.subr.mxu0 0.0
      %342 = vmatpush1.msra.mxu0 %v297
      %343 = vmatprep.subr.mxu0 0.0
      %344 = vmatpush1.msra.mxu0 %v296
      %345 = vmatprep.subr.mxu0 0.0
      %346 = vmatpush1.msra.mxu0 %v295
      %347 = vmatprep.subr.mxu0 0.0
      %348 = vmatpush1.msra.mxu0 %v294
      %349 = vmatprep.subr.mxu0 0.0
      %350 = vmatpush2.msra.mxu0 0.0
      %351 = vmatprep.subr.mxu0 0.0
      %352 = vmatpush2.msra.mxu0 0.0
      %353 = vmatprep.subr.mxu0 0.0
      %354 = vmatpush2.msra.mxu0 0.0
      %355 = vmatprep.subr.mxu0 0.0
      %356 = vmatpush2.msra.mxu0 0.0
      %357 = vmatprep.subr.mxu0 0.0
      %358 = vmatpush2.msra.mxu0 0.0
      %359 = vmatprep.subr.mxu0 0.0
      %360 = vmatpush2.msra.mxu0 0.0
      %361 = vmatprep.subr.mxu0 0.0
      %362 = vmatpush2.msra.mxu0 0.0
      %363 = vmatprep.subr.mxu0 0.0
      %364 = vmatpush2.msra.mxu0 0.0
      %365 = vmatprep.subr.mxu0 0.0
      %366 = vmatpush2.msra.mxu0 0.0
      %367 = vmatprep.subr.mxu0 0.0
      %368 = vmatpush2.msra.mxu0 0.0
      %369 = vmatprep.subr.mxu0 0.0
      %370 = vmatpush2.msra.mxu0 0.0
      %371 = vmatprep.subr.mxu0 0.0
      %372 = vmatpush2.msra.mxu0 0.0
      %373 = vmatprep.subr.mxu0 0.0
      %374 = vmatpush2.msra.mxu0 0.0
      %375 = vmatprep.subr.mxu0 0.0
      %376 = vmatpush2.msra.mxu0 0.0
      %377 = vmatprep.subr.mxu0 0.0
      %378 = vmatpush2.msra.mxu0 0.0
      %379 = vmatprep.subr.mxu0 0.0
      %380 = vmatpush2.msra.mxu0 0.0
      %381 = vmatprep.mubr.f32.mxu0 0.0
      %382 = vmatmul.mubr.f32.gmra.mxu0 %v293
      %v383 = vpop.f32.mrf.mxu0
      %v384 = vadd.f32 %v315, %v383
      %v385 = vpop.f32.mrf.mxu0
      %386 = vdwg.mxu0
      %v389 = vunpack.c.l.s4 1966171168
      %v390 = vunpack.c.0.s8 %v389
      %v391 = vlaneseq
      %v392 = vshrl.u32 %v391, 7
      %v393 = vsub.s32 %v390, %v392
      %v394 = vrot.slane %v384, %v393
      %v395 = vcombine.high %v394, %v394
      %v397 = vunpack.c.l.s4 1966171168
      %v398 = vunpack.c.0.s8 %v397
      %v399 = vlaneseq
      %v400 = vshrl.u32 %v399, 7
      %v401 = vsub.s32 %v398, %v400
      %v402 = vrot.slane %v394, %v401
      %v404 = vunpack.c.l.s4 1966171168
      %v405 = vunpack.c.0.s8 %v404
      %v406 = vlaneseq
      %v407 = vshrl.u32 %v406, 7
      %v408 = vsub.s32 %v405, %v407
      %v409 = vrot.slane %v395, %v408
      %vm412 = vcmask 16384
      %413 = vst.msk [vmem:[#allocation6] sm:$0x1] %vm412, %v402
      %414 = vst.msk [vmem:[#allocation6 + $0x1] sm:$0x1] %vm412, %v409
    $region33: #{tpu_custom_call.1} parent=1 // pred_fallthru
      _
    // Predicated region
    $region34: #{tpu_custom_call.1} parent=1 // pred_check
      _
    $region35: #{tpu_custom_call.1} parent=1 // pred_check_branch
      %416 = sbr.rel (0) target = $region37
    $region36: #{tpu_custom_call.1} parent=1 // pred_region
      %s418 = ssub.s32 32, 32
      %419 = vsyncadd [#allocation5], %s418
      %s420 = sshll.u32 [#allocation6], 4
      %s421 = int_to_ptr.vmem [resolvable:$true] %s420
      %426 = dma.vmem_to_hbm [thread:$0]  %s421, 32, %s5, [#allocation5], 16, 16, 1
    $region37: #{tpu_custom_call.1} parent=1 // pred_fallthru
      _
    // Predicated region
    $region38: #{tpu_custom_call.1} parent=1 // pred_check
      _
    $region39: #{tpu_custom_call.1} parent=1 // pred_check_branch
      %428 = sbr.rel (0) target = $region41
    $region40: #{tpu_custom_call.1} parent=1 // pred_region
      %429 = dma.done [#allocation5], 32
    $region41: #{tpu_custom_call.1} parent=1 // pred_fallthru
      _
    %430 = vsyncpa [#allocation4], 1
    %431 = vsyncpa [#allocation5], 1

</llo_original>
